<compile_context>
chip_gen: v5e
topology: v5e:2x2
jax: 0.10.0
libtpu: 0.0.40
codegen_flags: <defaults>
</compile_context>

<pallas_src>
import functools

import jax
import jax.numpy as jnp
from jax.experimental import pallas as pl
from jax.experimental.pallas import tpu as pltpu


def _round_up(x, m):
    return ((x + m - 1) // m) * m


def _cdiv(a, b):
    return (a + b - 1) // b


def _focal_loss_kernel(logits_ref, target_ref, out_ref, *, gamma, alpha, num_classes):
    # logits_ref: (C, TR, F) float; target_ref: (TR, F) int8/int32 (-1 marks padding);
    # out_ref: (1, 1, 1) float32 partial sum for this (batch, tile).
    tgt = target_ref[...].astype(jnp.int32)                    # (TR, F)

    # Running max over classes: plain dense vreg maxes (no cross-lane/sublane work).
    m = logits_ref[0].astype(jnp.float32)                       # (TR, F)
    for c in range(1, num_classes):
        m = jnp.maximum(m, logits_ref[c].astype(jnp.float32))

    # exp-sum + target-class logit / exp, fused into one unrolled pass over C.
    sum_e = None
    tgt_logit = jnp.zeros_like(m)
    tgt_e = jnp.zeros_like(m)
    for c in range(num_classes):
        x_c = logits_ref[c].astype(jnp.float32)
        e_c = jnp.exp(x_c - m)
        sum_e = e_c if sum_e is None else sum_e + e_c
        hit = tgt == c
        tgt_logit = jnp.where(hit, x_c, tgt_logit)
        tgt_e = jnp.where(hit, e_c, tgt_e)

    # Cross entropy (matches nn.CrossEntropyLoss(reduction='none')):
    #   ce = logsumexp(logits) - logits[target]   (clamped >= 0 against rounding only)
    ce = jnp.maximum(jnp.log(sum_e) - (tgt_logit - m), 0.0)

    # pt = softmax prob of the target class == exp(-ce), without an extra exp.
    pt = tgt_e / sum_e
    one_minus_pt = jnp.maximum(1.0 - pt, 0.0)

    g = float(gamma)
    if g == 2.0:
        w = one_minus_pt * one_minus_pt                        # fast path for the default gamma
    elif g == int(g) and g >= 0:
        gi = int(g)
        w = jnp.ones_like(one_minus_pt) if gi == 0 else one_minus_pt
        for _ in range(max(gi - 1, 0)):
            w = w * one_minus_pt
    else:
        w = one_minus_pt ** g

    focal = w * ce
    if alpha is not None:
        focal = alpha * focal

    valid = (tgt >= 0).astype(jnp.float32)                     # mask out padded pixels

    # One scalar partial per (batch, tile); the cross-lane reduce has plenty of XLU slack.
    out_ref[...] = jnp.sum(focal * valid).reshape(1, 1, 1)


def tumor_focal_loss(output, target, gamma=2.0, alpha=None, tile_pixels=65536):
    """output: (N, C, H, W) float logits (NCHW); target: (N, H, W) integer class ids."""
    N, C, H, W = output.shape
    HW = H * W
    LANE = 128
    SUBLANE_GRANULE = 32           # multiple of 32 rows also satisfies int8 (32,128) tiling

    # Lane width: 512 lanes (4 vregs wide) unless the image is smaller than that.
    F = min(512, _round_up(HW, LANE))
    R = _cdiv(HW, F)

    # Pixels per grid step: amortize per-step overhead but budget the double-buffered input
    # working set plus ~12 f32 temporaries per pixel so large-C cases still fit v7x VMEM.
    tgt_bytes_est = 1 if C <= 127 else 4
    per_pixel_vmem = 2 * (C * 4 + tgt_bytes_est) + 48
    vmem_budget = 16 * 1024 * 1024
    tp_target = max(F, min(int(tile_pixels), vmem_budget // per_pixel_vmem))

    tr_target = max(1, tp_target // F)
    num_tiles = _cdiv(R, tr_target)
    if num_tiles == 1:
        TR = R                                            # full-dim block: no row padding
    else:
        TR = _round_up(_cdiv(R, num_tiles), SUBLANE_GRANULE)   # balanced tiles, little padding
        num_tiles = _cdiv(R, TR)
    R_pad = TR * num_tiles
    HW_pad = R_pad * F

    # Narrow target dtype when safe: cuts HBM traffic ~15% at C=4 (biggest win on v5e).
    tgt_dtype = jnp.int8 if (C <= 127 and TR % 32 == 0) else jnp.int32

    logits = output.reshape(N, C, HW)                     # contiguous view, no NCHW->NHWC transpose
    tgt = target.reshape(N, HW).astype(tgt_dtype)
    if HW_pad != HW:
        logits = jnp.pad(logits, ((0, 0), (0, 0), (0, HW_pad - HW)))
        tgt = jnp.pad(tgt, ((0, 0), (0, HW_pad - HW)), constant_values=-1)
    logits = logits.reshape(N, C, R_pad, F)
    tgt = tgt.reshape(N, R_pad, F)

    kernel = functools.partial(
        _focal_loss_kernel,
        gamma=float(gamma),
        alpha=None if alpha is None else float(alpha),
        num_classes=C,
    )

    est_vmem = per_pixel_vmem * TR * F + (2 << 20)
    vmem_limit = int(min(64 * 1024 * 1024, max(32 * 1024 * 1024, 2 * est_vmem)))

    partials = pl.pallas_call(
        kernel,
        out_shape=jax.ShapeDtypeStruct((N, num_tiles, 1, 1), jnp.float32),
        grid_spec=pltpu.PrefetchScalarGridSpec(
            num_scalar_prefetch=0,
            grid=(N, num_tiles),                          # both axes independent -> both parallel
            in_specs=[
                pl.BlockSpec((None, C, TR, F), lambda n, t: (n, 0, t, 0)),
                pl.BlockSpec((None, TR, F), lambda n, t: (n, t, 0)),
            ],
            out_specs=pl.BlockSpec((None, 1, 1, 1), lambda n, t: (n, t, 0, 0)),
        ),
        compiler_params=pltpu.CompilerParams(
            dimension_semantics=("parallel", "parallel"),
            vmem_limit_bytes=vmem_limit,
        ),
    )(logits, tgt)

    # Mean over all real (unpadded) pixels; padded pixels contribute exactly 0.
    return jnp.sum(partials) / float(N * HW)


def _reference_focal_loss(output, target, gamma=2.0, alpha=None):
    # Pure-JAX reference matching the PyTorch module.
    N, C, H, W = output.shape
    logits = jnp.transpose(output, (0, 2, 3, 1)).reshape(-1, C).astype(jnp.float32)
    tgt = target.reshape(-1).astype(jnp.int32)
    lse = jax.scipy.special.logsumexp(logits, axis=-1)
    ce = lse - jnp.take_along_axis(logits, tgt[:, None], axis=-1)[:, 0]
    pt = jnp.exp(-ce)
    focal = (1.0 - pt) ** gamma * ce
    if alpha is not None:
        focal = alpha * focal
    return jnp.mean(focal)


if __name__ == "__main__":
    key = jax.random.PRNGKey(0)

    # Shapes implied by the module (NCHW logits + integer class targets).
    # 10x10 exercises lane padding / masking; 256x320 exercises the multi-tile,
    # int8-target, both-axes-parallel path.
    for (N, C, H, W) in [(2, 4, 16, 16), (2, 4, 10, 10), (1, 4, 256, 320)]:
        k1, k2 = jax.random.split(jax.random.fold_in(key, H * W))
        output = jax.random.normal(k1, (N, C, H, W), dtype=jnp.float32)
        target = jax.random.randint(k2, (N, H, W), 0, C, dtype=jnp.int32)

        loss = jax.block_until_ready(tumor_focal_loss(output, target, gamma=2.0))
        ref = _reference_focal_loss(output, target, gamma=2.0)
        assert jnp.allclose(loss, ref, rtol=1e-4, atol=1e-6), (H, W, loss, ref)

    print("KERNEL_OK")
</pallas_src>

<mosaic_0001>
module attributes {stable_mosaic.version = 11 : i64} {
  func.func @_focal_loss_kernel(%arg0: i32, %arg1: i32, %arg2: memref<1x4x1x256xf32, #tpu.memory_space<vmem>>, %arg3: memref<1x1x256xi32, #tpu.memory_space<vmem>>, %arg4: memref<1x1x1x1xf32, #tpu.memory_space<vmem>>) attributes {dimension_semantics = [#tpu.dimension_semantics<parallel>, #tpu.dimension_semantics<parallel>], iteration_bounds = array<i64: 2, 1>, scalar_prefetch = 0 : i64, scratch_operands = 0 : i64, tpu.core_type = #tpu.core_type<tc>, window_params = [{transform_indices = @transform_0, window_bounds = array<i64: 1, 4, 1, 256>}, {transform_indices = @transform_1, window_bounds = array<i64: 1, 1, 256>}, {transform_indices = @transform_2, window_bounds = array<i64: 1, 1, 1, 1>}]} {
    %c0 = arith.constant 0 : index
    %c0_0 = arith.constant 0 : index
    %c0_1 = arith.constant 0 : index
    %0 = vector.load %arg3[%c0, %c0_0, %c0_1] : memref<1x1x256xi32, #tpu.memory_space<vmem>>, vector<1x1x256xi32>
    %1 = vector.shape_cast %0 : vector<1x1x256xi32> to vector<1x256xi32>
    %c0_2 = arith.constant 0 : index
    %c0_3 = arith.constant 0 : index
    %c0_4 = arith.constant 0 : index
    %c0_5 = arith.constant 0 : index
    %2 = vector.load %arg2[%c0_2, %c0_3, %c0_4, %c0_5] : memref<1x4x1x256xf32, #tpu.memory_space<vmem>>, vector<1x1x1x256xf32>
    %3 = vector.shape_cast %2 : vector<1x1x1x256xf32> to vector<1x256xf32>
    %c0_6 = arith.constant 0 : index
    %c1 = arith.constant 1 : index
    %c0_7 = arith.constant 0 : index
    %c0_8 = arith.constant 0 : index
    %4 = vector.load %arg2[%c0_6, %c1, %c0_7, %c0_8] : memref<1x4x1x256xf32, #tpu.memory_space<vmem>>, vector<1x1x1x256xf32>
    %5 = vector.shape_cast %4 : vector<1x1x1x256xf32> to vector<1x256xf32>
    %6 = arith.maximumf %3, %5 : vector<1x256xf32>
    %c0_9 = arith.constant 0 : index
    %c2 = arith.constant 2 : index
    %c0_10 = arith.constant 0 : index
    %c0_11 = arith.constant 0 : index
    %7 = vector.load %arg2[%c0_9, %c2, %c0_10, %c0_11] : memref<1x4x1x256xf32, #tpu.memory_space<vmem>>, vector<1x1x1x256xf32>
    %8 = vector.shape_cast %7 : vector<1x1x1x256xf32> to vector<1x256xf32>
    %9 = arith.maximumf %6, %8 : vector<1x256xf32>
    %c0_12 = arith.constant 0 : index
    %c3 = arith.constant 3 : index
    %c0_13 = arith.constant 0 : index
    %c0_14 = arith.constant 0 : index
    %10 = vector.load %arg2[%c0_12, %c3, %c0_13, %c0_14] : memref<1x4x1x256xf32, #tpu.memory_space<vmem>>, vector<1x1x1x256xf32>
    %11 = vector.shape_cast %10 : vector<1x1x1x256xf32> to vector<1x256xf32>
    %12 = arith.maximumf %9, %11 : vector<1x256xf32>
    %cst = arith.constant 0.000000e+00 : f32
    %13 = vector.broadcast %cst : f32 to vector<1x256xf32>
    %cst_15 = arith.constant 0.000000e+00 : f32
    %14 = vector.broadcast %cst_15 : f32 to vector<1x256xf32>
    %c0_16 = arith.constant 0 : index
    %c0_17 = arith.constant 0 : index
    %c0_18 = arith.constant 0 : index
    %c0_19 = arith.constant 0 : index
    %15 = vector.load %arg2[%c0_16, %c0_17, %c0_18, %c0_19] : memref<1x4x1x256xf32, #tpu.memory_space<vmem>>, vector<1x1x1x256xf32>
    %16 = vector.shape_cast %15 : vector<1x1x1x256xf32> to vector<1x256xf32>
    %17 = arith.subf %16, %12 : vector<1x256xf32>
    %18 = math.exp %17 : vector<1x256xf32>
    %c0_i32 = arith.constant 0 : i32
    %19 = vector.broadcast %c0_i32 : i32 to vector<1x256xi32>
    %20 = arith.cmpi eq, %1, %19 : vector<1x256xi32>
    %21 = arith.select %20, %16, %13 : vector<1x256xi1>, vector<1x256xf32>
    %22 = arith.select %20, %18, %14 : vector<1x256xi1>, vector<1x256xf32>
    %c0_20 = arith.constant 0 : index
    %c1_21 = arith.constant 1 : index
    %c0_22 = arith.constant 0 : index
    %c0_23 = arith.constant 0 : index
    %23 = vector.load %arg2[%c0_20, %c1_21, %c0_22, %c0_23] : memref<1x4x1x256xf32, #tpu.memory_space<vmem>>, vector<1x1x1x256xf32>
    %24 = vector.shape_cast %23 : vector<1x1x1x256xf32> to vector<1x256xf32>
    %25 = arith.subf %24, %12 : vector<1x256xf32>
    %26 = math.exp %25 : vector<1x256xf32>
    %27 = arith.addf %18, %26 : vector<1x256xf32>
    %c1_i32 = arith.constant 1 : i32
    %28 = vector.broadcast %c1_i32 : i32 to vector<1x256xi32>
    %29 = arith.cmpi eq, %1, %28 : vector<1x256xi32>
    %30 = arith.select %29, %24, %21 : vector<1x256xi1>, vector<1x256xf32>
    %31 = arith.select %29, %26, %22 : vector<1x256xi1>, vector<1x256xf32>
    %c0_24 = arith.constant 0 : index
    %c2_25 = arith.constant 2 : index
    %c0_26 = arith.constant 0 : index
    %c0_27 = arith.constant 0 : index
    %32 = vector.load %arg2[%c0_24, %c2_25, %c0_26, %c0_27] : memref<1x4x1x256xf32, #tpu.memory_space<vmem>>, vector<1x1x1x256xf32>
    %33 = vector.shape_cast %32 : vector<1x1x1x256xf32> to vector<1x256xf32>
    %34 = arith.subf %33, %12 : vector<1x256xf32>
    %35 = math.exp %34 : vector<1x256xf32>
    %36 = arith.addf %27, %35 : vector<1x256xf32>
    %c2_i32 = arith.constant 2 : i32
    %37 = vector.broadcast %c2_i32 : i32 to vector<1x256xi32>
    %38 = arith.cmpi eq, %1, %37 : vector<1x256xi32>
    %39 = arith.select %38, %33, %30 : vector<1x256xi1>, vector<1x256xf32>
    %40 = arith.select %38, %35, %31 : vector<1x256xi1>, vector<1x256xf32>
    %c0_28 = arith.constant 0 : index
    %c3_29 = arith.constant 3 : index
    %c0_30 = arith.constant 0 : index
    %c0_31 = arith.constant 0 : index
    %41 = vector.load %arg2[%c0_28, %c3_29, %c0_30, %c0_31] : memref<1x4x1x256xf32, #tpu.memory_space<vmem>>, vector<1x1x1x256xf32>
    %42 = vector.shape_cast %41 : vector<1x1x1x256xf32> to vector<1x256xf32>
    %43 = arith.subf %42, %12 : vector<1x256xf32>
    %44 = math.exp %43 : vector<1x256xf32>
    %45 = arith.addf %36, %44 : vector<1x256xf32>
    %c3_i32 = arith.constant 3 : i32
    %46 = vector.broadcast %c3_i32 : i32 to vector<1x256xi32>
    %47 = arith.cmpi eq, %1, %46 : vector<1x256xi32>
    %48 = arith.select %47, %42, %39 : vector<1x256xi1>, vector<1x256xf32>
    %49 = arith.select %47, %44, %40 : vector<1x256xi1>, vector<1x256xf32>
    %50 = math.log %45 : vector<1x256xf32>
    %51 = arith.subf %48, %12 : vector<1x256xf32>
    %52 = arith.subf %50, %51 : vector<1x256xf32>
    %cst_32 = arith.constant 0.000000e+00 : f32
    %53 = vector.broadcast %cst_32 : f32 to vector<1x256xf32>
    %54 = arith.maximumf %52, %53 : vector<1x256xf32>
    %55 = arith.divf %49, %45 : vector<1x256xf32>
    %cst_33 = arith.constant 1.000000e+00 : f32
    %56 = vector.broadcast %cst_33 : f32 to vector<1x256xf32>
    %57 = arith.subf %56, %55 : vector<1x256xf32>
    %cst_34 = arith.constant 0.000000e+00 : f32
    %58 = vector.broadcast %cst_34 : f32 to vector<1x256xf32>
    %59 = arith.maximumf %57, %58 : vector<1x256xf32>
    %60 = arith.mulf %59, %59 : vector<1x256xf32>
    %61 = arith.mulf %60, %54 : vector<1x256xf32>
    %c0_i32_35 = arith.constant 0 : i32
    %62 = vector.broadcast %c0_i32_35 : i32 to vector<1x256xi32>
    %63 = arith.cmpi sge, %1, %62 : vector<1x256xi32>
    %64 = arith.extui %63 : vector<1x256xi1> to vector<1x256xi32>
    %65 = arith.sitofp %64 : vector<1x256xi32> to vector<1x256xf32>
    %66 = arith.mulf %61, %65 : vector<1x256xf32>
    %67 = vector.shape_cast %66 : vector<1x256xf32> to vector<1x1x256xf32>
    %cst_36 = arith.constant dense<0.000000e+00> : vector<1xf32>
    %68 = vector.multi_reduction <add>, %67, %cst_36 [1, 2] : vector<1x1x256xf32> to vector<1xf32>
    %69 = vector.shape_cast %68 : vector<1xf32> to vector<1x1x1xf32>
    %70 = vector.extract %69[0, 0, 0] : f32 from vector<1x1x1xf32>
    %71 = vector.broadcast %70 : f32 to vector<1x1x1xf32>
    %c0_37 = arith.constant 0 : index
    %c0_38 = arith.constant 0 : index
    %c0_39 = arith.constant 0 : index
    %c0_40 = arith.constant 0 : index
    %72 = vector.load %arg4[%c0_37, %c0_38, %c0_39, %c0_40] : memref<1x1x1x1xf32, #tpu.memory_space<vmem>>, vector<1x1x1x1xf32>
    %73 = vector.shape_cast %72 : vector<1x1x1x1xf32> to vector<1x1x1xf32>
    %74 = vector.shape_cast %71 : vector<1x1x1xf32> to vector<1x1x1x1xf32>
    tpu.vector_store %arg4[%c0_37, %c0_38, %c0_39, %c0_40], %74 {strides = array<i32>} : memref<1x1x1x1xf32, #tpu.memory_space<vmem>>, vector<1x1x1x1xf32>,
    return
  }
  func.func @transform_0(%arg0: i32, %arg1: i32) -> (i32, i32, i32, i32) {
    %c0_i32 = arith.constant 0 : i32
    %c0_i32_0 = arith.constant 0 : i32
    %c0_i32_1 = arith.constant 0 : i32
    return %arg0, %c0_i32, %arg1, %c0_i32_0 : i32, i32, i32, i32
  }
  func.func @transform_1(%arg0: i32, %arg1: i32) -> (i32, i32, i32) {
    %c0_i32 = arith.constant 0 : i32
    %c0_i32_0 = arith.constant 0 : i32
    return %arg0, %arg1, %c0_i32 : i32, i32, i32
  }
  func.func @transform_2(%arg0: i32, %arg1: i32) -> (i32, i32, i32, i32) {
    %c0_i32 = arith.constant 0 : i32
    %c0_i32_0 = arith.constant 0 : i32
    %c0_i32_1 = arith.constant 0 : i32
    return %arg0, %arg1, %c0_i32, %c0_i32_0 : i32, i32, i32, i32
  }
}

</mosaic_0001>

<llo_original>
// kernel: tpu_custom_call.1
$region0: #{tpu_custom_call.1}
  #allocation0 [shape = 'u32[]', space=smem, size = 0x4, offset = 0x4, fixed_abs, tag = 'smem constant byte address 0x4 - core index']
  #allocation1 [shape = 'u32[72,128]{1,0:T(1,128)}', space=vmem, size = 0x9000, scoped, tag = 'internal scratch']
  %s0 = inlined_call_operand.hbm [shape: f32[2,4,1,256], index: 0, kind: input, shape index: {}]
  %s1 = inlined_call_operand.hbm [shape: s32[2,1,256], index: 1, kind: input, shape index: {}]
  %s2 = inlined_call_operand.vmem [shape: f32[2,1,1,1], index: 2, kind: output, shape index: {}]
  %s3 = sld [smem:[#allocation0]]
  $region49: #{tpu_custom_call.1} parent=0
    _
  %s5 = ssub.s32 1, %s3
  %s6 = scalar_select 0, %s5, %s3
  $region1: #{tpu_custom_call.1} parent=0
    #allocation2 [shape = 'u8[8192]{0}', space=vmem, size = 0x2000, scoped, tag = 'input window, operand 0']
    #allocation3 [shape = 's32[2]{0}', space=sflag, size = 0x8, scoped, tag = 'scoped memory for tpu_custom_call.1']
    #allocation4 [shape = 'u8[2048]{0}', space=vmem, size = 0x800, scoped, tag = 'input window, operand 1']
    #allocation5 [shape = 's32[2]{0}', space=sflag, size = 0x8, scoped, tag = 'scoped memory for tpu_custom_call.1']
    %7 = vsyncpa [#allocation3], 0
    %s8 = scalar_lea.sflag [#allocation3], 1
    %9 = vsyncpa %s8, 0
    %10 = vsyncpa [#allocation5], 0
    %s11 = scalar_lea.sflag [#allocation5], 1
    %12 = vsyncpa %s11, 0
    loop: start=0, step=1, limit=4
    $region2: #{tpu_custom_call.1} parent=1 // loop_pre_header
      _
    $region3: #{tpu_custom_call.1} parent=1 // loop_header
      %s14 = sphi 0, %s18
      %p15 = scmp.ge.s32.totalorder %s14, 4
      %s21 = sphi 0, %s33
      %s22 = sphi 0, %s29
      %s23 = sphi 0, %s21
      %s24 = sphi 0, %s22
      %s25 = sphi 0, %s23
      %s26 = sphi 0, %s24
      %s38 = sphi 0, %s40
      %s41 = sphi 0, %s38
      %s42 = sphi 0, %s41
      %s58 = sphi 0, %s42
      %s66 = sphi 0, %s68
      %s69 = sphi 0, %s66
      %s70 = sphi 0, %s69
      %s86 = sphi 0, %s70
      %s94 = sphi 0, %s96
      %s97 = sphi 0, %s94
      %s98 = sphi 0, %s97
      %s114 = sphi 0, %s98
    $region4: #{tpu_custom_call.1} parent=1 // loop_header_branch
      %17 = sbr.rel (%p15) target = $region8
    $region5: #{tpu_custom_call.1} parent=1 // loop_body
      %s19 = ssub.s32 %s14, 1
      %s20 = ssub.s32 %s14, 2
      %s27 = sadd.s32 1, %s22
      %p28 = scmp.ge.s32.totalorder %s27, 1
      %s29 = scalar_select %p28, 0, %s27
      %s30 = sadd.s32 1, %s21
      %s31 = scalar_select %p28, %s30, %s21
      %p32 = scmp.ge.s32.totalorder %s31, 2
      %s33 = scalar_select %p32, 0, %s31
      %s34 = ssub.s32 %s21, %s33
      %s35 = ssub.s32 %s22, %s29
      %s36 = sor.u32 %s34, %s35
      %p37 = scmp.eq.s32.totalorder %s36, 0
      %s39 = sadd.s32 %s38, 1
      %s40 = scalar_select %p37, %s38, %s39
      %p43 = pneg %p37
      %p44 = scmp.eq.s32.totalorder %s14, 1
      %p45 = por %p43, %p44
      %p46 = scmp.ne.s32.totalorder %s38, %s41
      %p47 = scmp.eq.s32.totalorder %s14, 0
      %p48 = por %p46, %p47
      %p49 = scmp.ne.s32.totalorder %s38, %s41
      %p50 = scmp.eq.s32.totalorder %s19, 1
      %p51 = por %p49, %p50
      %p52 = scmp.ne.s32.totalorder %s41, %s42
      %p53 = scmp.eq.s32.totalorder %s19, 0
      %p54 = por %p52, %p53
      %p55 = scmp.ne.s32.totalorder %s41, %s42
      %p56 = scmp.eq.s32.totalorder %s20, 1
      %p57 = por %p55, %p56
      %p59 = scmp.ne.s32.totalorder %s42, %s58
      %p60 = scmp.eq.s32.totalorder %s20, 0
      %p61 = por %p59, %p60
      %s62 = ssub.s32 %s21, %s33
      %s63 = ssub.s32 %s22, %s29
      %s64 = sor.u32 %s62, %s63
      %p65 = scmp.eq.s32.totalorder %s64, 0
      %s67 = sadd.s32 %s66, 1
      %s68 = scalar_select %p65, %s66, %s67
      %p71 = pneg %p65
      %p72 = scmp.eq.s32.totalorder %s14, 1
      %p73 = por %p71, %p72
      %p74 = scmp.ne.s32.totalorder %s66, %s69
      %p75 = scmp.eq.s32.totalorder %s14, 0
      %p76 = por %p74, %p75
      %p77 = scmp.ne.s32.totalorder %s66, %s69
      %p78 = scmp.eq.s32.totalorder %s19, 1
      %p79 = por %p77, %p78
      %p80 = scmp.ne.s32.totalorder %s69, %s70
      %p81 = scmp.eq.s32.totalorder %s19, 0
      %p82 = por %p80, %p81
      %p83 = scmp.ne.s32.totalorder %s69, %s70
      %p84 = scmp.eq.s32.totalorder %s20, 1
      %p85 = por %p83, %p84
      %p87 = scmp.ne.s32.totalorder %s70, %s86
      %p88 = scmp.eq.s32.totalorder %s20, 0
      %p89 = por %p87, %p88
      %s90 = ssub.s32 %s21, %s33
      %s91 = ssub.s32 %s22, %s29
      %s92 = sor.u32 %s90, %s91
      %p93 = scmp.eq.s32.totalorder %s92, 0
      %s95 = sadd.s32 %s94, 1
      %s96 = scalar_select %p93, %s94, %s95
      %p99 = pneg %p93
      %p100 = scmp.eq.s32.totalorder %s14, 1
      %p101 = por %p99, %p100
      %p102 = scmp.ne.s32.totalorder %s94, %s97
      %p103 = scmp.eq.s32.totalorder %s14, 0
      %p104 = por %p102, %p103
      %p105 = scmp.ne.s32.totalorder %s94, %s97
      %p106 = scmp.eq.s32.totalorder %s19, 1
      %p107 = por %p105, %p106
      %p108 = scmp.ne.s32.totalorder %s97, %s98
      %p109 = scmp.eq.s32.totalorder %s19, 0
      %p110 = por %p108, %p109
      %p111 = scmp.ne.s32.totalorder %s97, %s98
      %p112 = scmp.eq.s32.totalorder %s20, 1
      %p113 = por %p111, %p112
      %p115 = scmp.ne.s32.totalorder %s98, %s114
      %p116 = scmp.eq.s32.totalorder %s20, 0
      %p117 = por %p115, %p116
      %p118 = scmp.le.s32.totalorder 1, %s14
      %p119 = scmp.lt.s32.totalorder %s14, 3
      %p120 = pnand %p118, %p119
      %p121 = pneg %p120
      // Predicated region
      $region9: #{tpu_custom_call.1} parent=5 // pred_check
        _
      $region10: #{tpu_custom_call.1} parent=5 // pred_check_branch
        %123 = sbr.rel (%p120) target = $region12
      $region11: #{tpu_custom_call.1} parent=5 // pred_region
        %s124 = ssub.s32 %s14, 1
      $region12: #{tpu_custom_call.1} parent=5 // pred_fallthru
        _
      %p125 = scmp.lt.s32.totalorder %s14, 2
      // Predicated region
      $region13: #{tpu_custom_call.1} parent=5 // pred_check
        %p126 = pneg %p125
      $region14: #{tpu_custom_call.1} parent=5 // pred_check_branch
        %128 = sbr.rel (%p126) target = $region16
      $region15: #{tpu_custom_call.1} parent=5 // pred_region
        // Predicated region
        $region17: #{tpu_custom_call.1} parent=15 // pred_check
          %p129 = pneg %p48
        $region18: #{tpu_custom_call.1} parent=15 // pred_check_branch
          %131 = sbr.rel (%p129) target = $region20
        $region19: #{tpu_custom_call.1} parent=15 // pred_region
          %s132 = sand.u32 %s38, 1
          %s133 = scalar_lea.sflag [#allocation3], %s132
          %s134 = sand.u32 %s38, 1
          %s135 = smul.addr %s134, 8
          %s136 = scalar_lea.vmem [#allocation2], %s135
          %138 = vsyncadd %s133, 0
          %s139 = smul.addr %s22, 2
          %s140 = smul.addr %s21, 8
          %s141 = sadd.s32 %s139, %s140
          %s142 = scalar_lea.hbm %s0, %s141
          %s143 = sshll.u32 %s142, 4
          %s144 = int_to_ptr.hbm [resolvable:$true] %s143
          %s145 = sshll.u32 %s136, 4
          %s146 = int_to_ptr.vmem [resolvable:$true] %s145
          %151 = dma.hbm_to_vmem [thread:$0]  %s144, 128, %s146, %s133, 32, 32, 2
        $region20: #{tpu_custom_call.1} parent=15 // pred_fallthru
          _
        // Predicated region
        $region21: #{tpu_custom_call.1} parent=15 // pred_check
          %p152 = pneg %p76
        $region22: #{tpu_custom_call.1} parent=15 // pred_check_branch
          %154 = sbr.rel (%p152) target = $region24
        $region23: #{tpu_custom_call.1} parent=15 // pred_region
          %s155 = sand.u32 %s66, 1
          %s156 = scalar_lea.sflag [#allocation5], %s155
          %s157 = sand.u32 %s66, 1
          %s158 = smul.addr %s157, 2
          %s159 = scalar_lea.vmem [#allocation4], %s158
          %161 = vsyncadd %s156, 0
          %s162 = smul.addr %s22, 2
          %s163 = smul.addr %s21, 2
          %s164 = sadd.s32 %s162, %s163
          %s165 = scalar_lea.hbm %s1, %s164
          %s167 = sshll.u32 %s165, 4
          %s168 = int_to_ptr.hbm [resolvable:$true] %s167
          %s169 = sshll.u32 %s159, 4
          %s170 = int_to_ptr.vmem [resolvable:$true] %s169
          %172 = dma.hbm_to_vmem [thread:$0]  %s168, 32, %s170, %s156
        $region24: #{tpu_custom_call.1} parent=15 // pred_fallthru
          _
      $region16: #{tpu_custom_call.1} parent=5 // pred_fallthru
        _
      %p173 = scmp.le.s32.totalorder 1, %s14
      %p174 = scmp.lt.s32.totalorder %s14, 3
      %p175 = pnand %p173, %p174
      %p176 = pneg %p175
      // Predicated region
      $region25: #{tpu_custom_call.1} parent=5 // pred_check
        _
      $region26: #{tpu_custom_call.1} parent=5 // pred_check_branch
        %178 = sbr.rel (%p175) target = $region28
      $region27: #{tpu_custom_call.1} parent=5 // pred_region
        %s179 = ssub.s32 %s14, 1
        %s180 = sand.u32 %s41, 1
        %s181 = scalar_lea.sflag [#allocation3], %s180
        %s182 = sand.u32 %s41, 1
        %s183 = smul.addr %s182, 8
        %s184 = scalar_lea.vmem [#allocation2], %s183
        // Predicated region
        $region29: #{tpu_custom_call.1} parent=27 // pred_check
          %p185 = pneg %p54
        $region30: #{tpu_custom_call.1} parent=27 // pred_check_branch
          %187 = sbr.rel (%p185) target = $region32
        $region31: #{tpu_custom_call.1} parent=27 // pred_region
          %189 = dma.done %s181, 128
        $region32: #{tpu_custom_call.1} parent=27 // pred_fallthru
          _
        %s190 = sand.u32 %s69, 1
        %s191 = scalar_lea.sflag [#allocation5], %s190
        %s192 = sand.u32 %s69, 1
        %s193 = smul.addr %s192, 2
        %s194 = scalar_lea.vmem [#allocation4], %s193
        // Predicated region
        $region33: #{tpu_custom_call.1} parent=27 // pred_check
          %p195 = pneg %p82
        $region34: #{tpu_custom_call.1} parent=27 // pred_check_branch
          %197 = sbr.rel (%p195) target = $region36
        $region35: #{tpu_custom_call.1} parent=27 // pred_region
          %199 = dma.done %s191, 32
        $region36: #{tpu_custom_call.1} parent=27 // pred_fallthru
          _
        %s200 = sand.u32 %s41, 1
        %s201 = scalar_lea.sflag [#allocation3], %s200
        %s202 = sand.u32 %s41, 1
        %s203 = smul.addr %s202, 8
        %s204 = scalar_lea.vmem [#allocation2], %s203
        %p205 = pneg %p54
        %p206 = pneg %p51
        %s207 = sand.u32 %s69, 1
        %s208 = scalar_lea.sflag [#allocation5], %s207
        %s209 = sand.u32 %s69, 1
        %s210 = smul.addr %s209, 2
        %s211 = scalar_lea.vmem [#allocation4], %s210
        %p212 = pneg %p82
        %p213 = pneg %p79
        %p214 = pneg %p110
        %p215 = pneg %p107
        %p216 = scmp.lt.s32.totalorder %s23, 1
        %s217 = scalar_select %p216, %s23, 1
        %p218 = scmp.lt.s32.totalorder %s24, 0
        %s219 = scalar_select %p218, %s24, 0
        %s220 = sadd.s32 %s219, %s217
        %s221 = scalar_lea.vmem %s2, %s220
        %p222 = scmp.lt.s32.totalorder %s23, 1
        %s223 = scalar_select %p222, %s23, 1
        %p224 = scmp.lt.s32.totalorder %s24, 0
        %s225 = scalar_select %p224, %s24, 0
        %s226 = sadd.s32 %s225, %s223
        %s227 = scalar_lea.vmem %s2, %s226
        %v228 = vld [vmem:[%s194] sm:$0x3]
        %v229 = vld [vmem:[%s184] sm:$0x3]
        %s230 = scalar_lea.vmem %s184, 2 [#allocation2]
        %v231 = vld [vmem:[%s230] sm:$0x3]
        %v232 = vmax.f32 %v229, %v231
        %s233 = scalar_lea.vmem %s184, 4 [#allocation2]
        %v234 = vld [vmem:[%s233] sm:$0x3]
        %v235 = vmax.f32 %v232, %v234
        %s236 = scalar_lea.vmem %s184, 6 [#allocation2]
        %v237 = vld [vmem:[%s236] sm:$0x3]
        %v238 = vmax.f32 %v235, %v237
        %v239 = vsub.f32 %v229, %v238
        %v240 = vmul.f32 %v239, 1.442695
        %v241 = vpow.pop %v240
        %vm242 = vcmp.eq.s32.totalorder %v228, 0
        %v243 = vsel %vm242, %v229, 0.0
        %v244 = vsel %vm242, %v241, 0.0
        %v245 = vsub.f32 %v231, %v238
        %v246 = vmul.f32 %v245, 1.442695
        %v247 = vpow.pop %v246
        %v248 = vadd.f32 %v241, %v247
        %vm249 = vcmp.eq.s32.totalorder %v228, 1
        %v250 = vsel %vm249, %v231, %v243
        %v251 = vsel %vm249, %v247, %v244
        %v252 = vsub.f32 %v234, %v238
        %v253 = vmul.f32 %v252, 1.442695
        %v254 = vpow.pop %v253
        %v255 = vadd.f32 %v248, %v254
        %vm256 = vcmp.eq.s32.totalorder %v228, 2
        %v257 = vsel %vm256, %v234, %v250
        %v258 = vsel %vm256, %v254, %v251
        %v259 = vsub.f32 %v237, %v238
        %v260 = vmul.f32 %v259, 1.442695
        %v261 = vpow.pop %v260
        %v262 = vadd.f32 %v255, %v261
        %vm263 = vcmp.eq.s32.totalorder %v228, 3
        %v264 = vsel %vm263, %v237, %v257
        %v265 = vsel %vm263, %v261, %v258
        %v266 = vlog2.pop %v262
        %v267 = vmul.f32 %v266, 0.6931472
        %v268 = vsub.f32 %v264, %v238
        %v269 = vsub.f32 %v267, %v268
        %v270 = vmax.f32 %v269, 0.0
        %v271 = vrcp.pop %v262
        %v272 = vmul.f32 %v262, %v271
        %v273 = vsub.f32 1.0, %v272
        %v274 = vmul.f32 %v271, %v273
        %v275 = vadd.f32 %v271, %v274
        %vm276 = vweird.f32 %v262
        %vm277 = vweird.f32 %v271
        %vm278 = vmor %vm276, %vm277
        %v279 = vsel %vm278, %v271, %v275
        %v280 = vand.u32 2147483647, %v262
        %vm281 = vcmp.eq.f32.partialorder %v280, 8.507059e+37
        %v282 = vand.u32 %v262, 2147483648
        %v283 = vor.u32 1.1754944e-38, %v282
        %v284 = vsel %vm281, %v283, %v279
        %v285 = vmul.f32 %v265, %v284
        %v286 = vsub.f32 1.0, %v285
        %v287 = vmax.f32 %v286, 0.0
        %v288 = vmul.f32 %v287, %v287
        %v289 = vmul.f32 %v288, %v270
        %vm290 = vcmp.ge.s32.totalorder %v228, 0
        %v291 = vsel %vm290, 1, 0
        %v292 = vcvt.s32.f32 %v291
        %v293 = vmul.f32 %v289, %v292
        %v295 = vperm.slane %v293, 0
        %v296 = vperm.slane %v293, 1
        %vm299 = vcmask 1040384
        %v300 = vsel %vm299, %v295, 0.0
        %v301 = vsel %vm299, %v296, 0.0
        %v302 = vadd.f32 %v300, %v301
        %303 = vadd.xlane.f32.xlu0 %v302
        %v304 = vpop.xlane.xlu0 %303
        %v305 = vrot.slane %v304, 4
        %v306 = vadd.f32 %v304, %v305
        %v307 = vrot.slane %v306, 2
        %v308 = vadd.f32 %v306, %v307
        %v309 = vrot.slane %v308, 1
        %v310 = vadd.f32 %v308, %v309
        %s311 = vtos %v310
        %v312 = vstv %s311
        %vm313 = vcmask 0
        %314 = vst.msk [vmem:[%s227] sm:$0x1] %vm313, %v312
        %p315 = scmp.lt.s32.totalorder %s23, 1
        %s316 = scalar_select %p315, %s23, 1
        %p317 = scmp.lt.s32.totalorder %s24, 0
        %s318 = scalar_select %p317, %s24, 0
        %s319 = sadd.s32 %s318, %s316
        %s320 = scalar_lea.vmem %s2, %s319
        // Predicated region
        $region37: #{tpu_custom_call.1} parent=27 // pred_check
          %p321 = pneg %p107
        $region38: #{tpu_custom_call.1} parent=27 // pred_check_branch
          %323 = sbr.rel (%p321) target = $region40
        $region39: #{tpu_custom_call.1} parent=27 // pred_region
          _
        $region40: #{tpu_custom_call.1} parent=27 // pred_fallthru
          _
      $region28: #{tpu_custom_call.1} parent=5 // pred_fallthru
        _
      %p324 = scmp.le.s32.totalorder 2, %s14
      // Predicated region
      $region41: #{tpu_custom_call.1} parent=5 // pred_check
        %p325 = pneg %p324
      $region42: #{tpu_custom_call.1} parent=5 // pred_check_branch
        %327 = sbr.rel (%p325) target = $region44
      $region43: #{tpu_custom_call.1} parent=5 // pred_region
        %s328 = ssub.s32 %s14, 2
        // Predicated region
        $region45: #{tpu_custom_call.1} parent=43 // pred_check
          %p329 = pneg %p113
        $region46: #{tpu_custom_call.1} parent=43 // pred_check_branch
          %331 = sbr.rel (%p329) target = $region48
        $region47: #{tpu_custom_call.1} parent=43 // pred_region
          %p332 = scmp.lt.s32.totalorder %s25, 1
          %s333 = scalar_select %p332, %s25, 1
          %p334 = scmp.lt.s32.totalorder %s26, 0
          %s335 = scalar_select %p334, %s26, 0
          %s336 = sadd.s32 %s335, %s333
          %s337 = scalar_lea.vmem %s2, %s336
        $region48: #{tpu_custom_call.1} parent=43 // pred_fallthru
          _
      $region44: #{tpu_custom_call.1} parent=5 // pred_fallthru
        _
    $region6: #{tpu_custom_call.1} parent=1 // loop_footer
      %s18 = sadd.s32 1, %s14
    $region7: #{tpu_custom_call.1} parent=1 // loop_footer_branch
      %13 = sbr.rel target = $region3
    $region8: #{tpu_custom_call.1} parent=1 // loop_exit
      _
    %338 = vsyncpa [#allocation3], 1
    %s339 = scalar_lea.sflag [#allocation3], 1
    %340 = vsyncpa %s339, 1
    %341 = vsyncpa [#allocation5], 1
    %s342 = scalar_lea.sflag [#allocation5], 1
    %343 = vsyncpa %s342, 1

</llo_original>
